<compile_context>
chip_gen: v6e
topology: v6e:2x2x1
jax: 0.10.0
libtpu: 0.0.40
codegen_flags: <defaults>
</compile_context>

<pallas_src>
import functools

import jax
import jax.numpy as jnp
from jax.experimental import pallas as pl
from jax.experimental.pallas import tpu as pltpu


def _mixa_kernel(x_ref, skin_ref, out_ref, attn_ref, *, wh_valid, wh_pad):
    # x_ref:    (1, C, Tt, WHp)    skin_ref: (1, Tt, WHp)
    # out_ref:  (1, C, Tt, WHp)    attn_ref: (1, Tt, WHp)
    x = x_ref[0].astype(jnp.float32)            # (C, Tt, WHp)
    skin = skin_ref[0].astype(jnp.float32)      # (Tt, WHp)

    # Channel pooling over the leading (untiled) C axis -> VPU adds/maxes,
    # keeps the XLU free for the softmax lane-reduce.
    avg = jnp.mean(x, axis=0)                   # (Tt, WHp)
    mx = jnp.max(x, axis=0)                     # (Tt, WHp)
    fusion = jax.nn.sigmoid(avg) + jax.nn.sigmoid(mx) + skin

    if wh_valid != wh_pad:                      # static (compile-time) branch
        lane = jax.lax.broadcasted_iota(jnp.int32, fusion.shape, dimension=1)
        fusion = jnp.where(lane < wh_valid, fusion, -jnp.inf)

    # Softmax over the spatial (lane) axis.
    m = jnp.max(fusion, axis=-1, keepdims=True)
    e = jnp.exp(fusion - m)
    s = jnp.sum(e, axis=-1, keepdims=True)
    r = pl.reciprocal(s, approx=True)           # EUP slot
    r = r * (2.0 - s * r)                       # one Newton step -> ~f32 exact
    attn = e * r                                # (Tt, WHp)

    out_ref[0] = (x * attn[None]).astype(out_ref.dtype)
    attn_ref[0] = attn


def _choose_tt(T, C, WHp, itemsize, target_bytes=2 << 20):
    """Largest Tt dividing T with Tt % 8 == 0 (or Tt == T) whose x block fits."""
    cands = [tt for tt in range(1, T + 1)
             if T % tt == 0 and (tt % 8 == 0 or tt == T)]
    fitting = [tt for tt in cands if C * tt * WHp * itemsize <= target_bytes]
    return max(fitting) if fitting else min(cands)


def mixa_module(x, skin):
    """x: (B, C, T, W, H), skin: (B, T, W, H).

    Returns (out, attention_weight) matching the PyTorch module:
      out: (B, C, T, W, H) in x.dtype, attention_weight: (B, T, W, H) float32.
    """
    B, C, T, W, H = x.shape
    WH = W * H
    WHp = ((WH + 127) // 128) * 128  # lane-dense stores

    # Native-layout reshapes only -- no HBM transposes.
    x_k = x.reshape(B, C, T, WH)
    skin_k = skin.reshape(B, T, WH)
    if WHp != WH:
        x_k = jnp.pad(x_k, ((0, 0), (0, 0), (0, 0), (0, WHp - WH)))
        skin_k = jnp.pad(skin_k, ((0, 0), (0, 0), (0, WHp - WH)))

    itemsize = jnp.dtype(x.dtype).itemsize
    Tt = _choose_tt(T, C, WHp, itemsize)
    grid = (B, T // Tt)

    # VMEM budget: double-buffered x/out blocks + skin/attn blocks (+ headroom).
    blk_x = C * Tt * WHp * itemsize
    blk_row = Tt * WHp * 4
    per_step = 2 * (2 * blk_x + 2 * blk_row)
    vmem_limit = int(min(max(2 * per_step, 32 << 20), 48 << 20))

    kernel = functools.partial(_mixa_kernel, wh_valid=WH, wh_pad=WHp)

    out_k, attn_k = pl.pallas_call(
        kernel,
        out_shape=(
            jax.ShapeDtypeStruct((B, C, T, WHp), x.dtype),
            jax.ShapeDtypeStruct((B, T, WHp), jnp.float32),
        ),
        grid_spec=pltpu.PrefetchScalarGridSpec(
            num_scalar_prefetch=0,
            grid=grid,
            in_specs=[
                pl.BlockSpec((1, C, Tt, WHp), lambda b, t: (b, 0, t, 0)),
                pl.BlockSpec((1, Tt, WHp), lambda b, t: (b, t, 0)),
            ],
            out_specs=[
                pl.BlockSpec((1, C, Tt, WHp), lambda b, t: (b, 0, t, 0)),
                pl.BlockSpec((1, Tt, WHp), lambda b, t: (b, t, 0)),
            ],
        ),
        compiler_params=pltpu.CompilerParams(
            dimension_semantics=("parallel", "parallel"),
            vmem_limit_bytes=vmem_limit,
        ),
        cost_estimate=pl.CostEstimate(
            flops=4 * B * C * T * WHp,
            transcendentals=3 * B * T * WHp,
            bytes_accessed=2 * B * C * T * WHp * itemsize + 2 * B * T * WHp * 4,
        ),
    )(x_k, skin_k)

    out = out_k[..., :WH].reshape(B, C, T, W, H)
    attn = attn_k[..., :WH].reshape(B, T, W, H)
    return out, attn


def _reference(x, skin):
    B, C, T, W, H = x.shape
    xf = x.astype(jnp.float32).reshape(B, C, -1)                 # (B, C, TWH)
    avg = jax.nn.sigmoid(jnp.mean(xf, axis=1)).reshape(B, T, W, H)
    mx = jax.nn.sigmoid(jnp.max(xf, axis=1)).reshape(B, T, W, H)
    fusion = avg + mx + skin.astype(jnp.float32)
    attn = jax.nn.softmax(fusion.reshape(B, T, -1), axis=-1).reshape(B, T, W, H)
    out = x.astype(jnp.float32) * attn[:, None, :, :, :]
    return out.astype(x.dtype), attn


if __name__ == "__main__":
    key = jax.random.PRNGKey(0)
    kx, ks = jax.random.split(key)
    B, C, T, W, H = 2, 4, 8, 16, 16
    x = jax.random.normal(kx, (B, C, T, W, H), dtype=jnp.float32)
    skin = jax.random.uniform(ks, (B, T, W, H), dtype=jnp.float32)

    out, attn = mixa_module(x, skin)
    jax.block_until_ready((out, attn))

    out_ref, attn_ref = _reference(x, skin)
    assert jnp.allclose(out, out_ref, atol=1e-5, rtol=1e-5)
    assert jnp.allclose(attn, attn_ref, atol=1e-5, rtol=1e-5)
    print("KERNEL_OK")
</pallas_src>

<mosaic_0001>
module attributes {stable_mosaic.version = 11 : i64} {
  func.func @_mixa_kernel(%arg0: i32, %arg1: i32, %arg2: memref<1x4x8x256xf32, #tpu.memory_space<vmem>>, %arg3: memref<1x8x256xf32, #tpu.memory_space<vmem>>, %arg4: memref<1x4x8x256xf32, #tpu.memory_space<vmem>>, %arg5: memref<1x8x256xf32, #tpu.memory_space<vmem>>) attributes {dimension_semantics = [#tpu.dimension_semantics<parallel>, #tpu.dimension_semantics<parallel>], iteration_bounds = array<i64: 2, 1>, scalar_prefetch = 0 : i64, scratch_operands = 0 : i64, tpu.core_type = #tpu.core_type<tc>, window_params = [{transform_indices = @transform_0, window_bounds = array<i64: 1, 4, 8, 256>}, {transform_indices = @transform_1, window_bounds = array<i64: 1, 8, 256>}, {transform_indices = @transform_2, window_bounds = array<i64: 1, 4, 8, 256>}, {transform_indices = @transform_3, window_bounds = array<i64: 1, 8, 256>}]} {
    %c0 = arith.constant 0 : index
    %c0_0 = arith.constant 0 : index
    %c0_1 = arith.constant 0 : index
    %c0_2 = arith.constant 0 : index
    %0 = vector.load %arg2[%c0, %c0_0, %c0_1, %c0_2] : memref<1x4x8x256xf32, #tpu.memory_space<vmem>>, vector<1x4x8x256xf32>
    %1 = vector.shape_cast %0 : vector<1x4x8x256xf32> to vector<4x8x256xf32>
    %c0_3 = arith.constant 0 : index
    %c0_4 = arith.constant 0 : index
    %c0_5 = arith.constant 0 : index
    %2 = vector.load %arg3[%c0_3, %c0_4, %c0_5] : memref<1x8x256xf32, #tpu.memory_space<vmem>>, vector<1x8x256xf32>
    %3 = vector.shape_cast %2 : vector<1x8x256xf32> to vector<8x256xf32>
    %cst = arith.constant dense<0.000000e+00> : vector<8x256xf32>
    %4 = vector.multi_reduction <add>, %1, %cst [0] : vector<4x8x256xf32> to vector<8x256xf32>
    %cst_6 = arith.constant 4.000000e+00 : f32
    %5 = vector.broadcast %cst_6 : f32 to vector<8x256xf32>
    %6 = arith.divf %4, %5 : vector<8x256xf32>
    %cst_7 = arith.constant dense<0xFF800000> : vector<8x256xf32>
    %7 = vector.multi_reduction <maximumf>, %1, %cst_7 [0] : vector<4x8x256xf32> to vector<8x256xf32>
    %8 = arith.negf %6 : vector<8x256xf32>
    %9 = math.exp %8 : vector<8x256xf32>
    %cst_8 = arith.constant 1.000000e+00 : f32
    %10 = vector.broadcast %cst_8 : f32 to vector<8x256xf32>
    %11 = arith.addf %10, %9 : vector<8x256xf32>
    %12 = arith.divf %10, %11 : vector<8x256xf32>
    %13 = arith.negf %7 : vector<8x256xf32>
    %14 = math.exp %13 : vector<8x256xf32>
    %cst_9 = arith.constant 1.000000e+00 : f32
    %15 = vector.broadcast %cst_9 : f32 to vector<8x256xf32>
    %16 = arith.addf %15, %14 : vector<8x256xf32>
    %17 = arith.divf %15, %16 : vector<8x256xf32>
    %18 = arith.addf %12, %17 : vector<8x256xf32>
    %19 = arith.addf %18, %3 : vector<8x256xf32>
    %cst_10 = arith.constant dense<0xFF800000> : vector<8xf32>
    %20 = vector.multi_reduction <maximumf>, %19, %cst_10 [1] : vector<8x256xf32> to vector<8xf32>
    %21 = vector.shape_cast %20 : vector<8xf32> to vector<8x1xf32>
    %22 = vector.broadcast %21 : vector<8x1xf32> to vector<8x256xf32>
    %23 = arith.subf %19, %22 : vector<8x256xf32>
    %24 = math.exp %23 : vector<8x256xf32>
    %cst_11 = arith.constant dense<0.000000e+00> : vector<8xf32>
    %25 = vector.multi_reduction <add>, %24, %cst_11 [1] : vector<8x256xf32> to vector<8xf32>
    %26 = vector.shape_cast %25 : vector<8xf32> to vector<8x1xf32>
    %27 = tpu.reciprocal %26 {approx = true} : vector<8x1xf32> -> vector<8x1xf32>
    %28 = arith.mulf %26, %27 : vector<8x1xf32>
    %cst_12 = arith.constant 2.000000e+00 : f32
    %29 = vector.broadcast %cst_12 : f32 to vector<8x1xf32>
    %30 = arith.subf %29, %28 : vector<8x1xf32>
    %31 = arith.mulf %27, %30 : vector<8x1xf32>
    %32 = vector.broadcast %31 : vector<8x1xf32> to vector<8x256xf32>
    %33 = arith.mulf %24, %32 : vector<8x256xf32>
    %34 = vector.shape_cast %33 : vector<8x256xf32> to vector<1x8x256xf32>
    %35 = vector.broadcast %34 : vector<1x8x256xf32> to vector<4x8x256xf32>
    %36 = arith.mulf %1, %35 : vector<4x8x256xf32>
    %c0_13 = arith.constant 0 : index
    %c0_14 = arith.constant 0 : index
    %c0_15 = arith.constant 0 : index
    %c0_16 = arith.constant 0 : index
    %37 = vector.load %arg4[%c0_13, %c0_14, %c0_15, %c0_16] : memref<1x4x8x256xf32, #tpu.memory_space<vmem>>, vector<1x4x8x256xf32>
    %38 = vector.shape_cast %37 : vector<1x4x8x256xf32> to vector<4x8x256xf32>
    %39 = vector.shape_cast %36 : vector<4x8x256xf32> to vector<1x4x8x256xf32>
    tpu.vector_store %arg4[%c0_13, %c0_14, %c0_15, %c0_16], %39 {strides = array<i32>} : memref<1x4x8x256xf32, #tpu.memory_space<vmem>>, vector<1x4x8x256xf32>,
    %c0_17 = arith.constant 0 : index
    %c0_18 = arith.constant 0 : index
    %c0_19 = arith.constant 0 : index
    %40 = vector.load %arg5[%c0_17, %c0_18, %c0_19] : memref<1x8x256xf32, #tpu.memory_space<vmem>>, vector<1x8x256xf32>
    %41 = vector.shape_cast %40 : vector<1x8x256xf32> to vector<8x256xf32>
    %42 = vector.shape_cast %33 : vector<8x256xf32> to vector<1x8x256xf32>
    tpu.vector_store %arg5[%c0_17, %c0_18, %c0_19], %42 {strides = array<i32>} : memref<1x8x256xf32, #tpu.memory_space<vmem>>, vector<1x8x256xf32>,
    return
  }
  func.func @transform_0(%arg0: i32, %arg1: i32) -> (i32, i32, i32, i32) {
    %c0_i32 = arith.constant 0 : i32
    %c0_i32_0 = arith.constant 0 : i32
    %c0_i32_1 = arith.constant 0 : i32
    return %arg0, %c0_i32, %arg1, %c0_i32_0 : i32, i32, i32, i32
  }
  func.func @transform_1(%arg0: i32, %arg1: i32) -> (i32, i32, i32) {
    %c0_i32 = arith.constant 0 : i32
    %c0_i32_0 = arith.constant 0 : i32
    return %arg0, %arg1, %c0_i32 : i32, i32, i32
  }
  func.func @transform_2(%arg0: i32, %arg1: i32) -> (i32, i32, i32, i32) {
    %c0_i32 = arith.constant 0 : i32
    %c0_i32_0 = arith.constant 0 : i32
    %c0_i32_1 = arith.constant 0 : i32
    return %arg0, %c0_i32, %arg1, %c0_i32_0 : i32, i32, i32, i32
  }
  func.func @transform_3(%arg0: i32, %arg1: i32) -> (i32, i32, i32) {
    %c0_i32 = arith.constant 0 : i32
    %c0_i32_0 = arith.constant 0 : i32
    return %arg0, %arg1, %c0_i32 : i32, i32, i32
  }
}

</mosaic_0001>

<llo_original>
// kernel: tpu_custom_call.1
$region0: #{tpu_custom_call.1}
  #allocation0 [shape = 'u32[]', space=smem, size = 0x4, offset = 0x4, fixed_abs, tag = 'smem constant byte address 0x4 - core index']
  #allocation1 [shape = 'u32[144,128]{1,0:T(1,128)}', space=vmem, size = 0x12000, scoped, tag = 'internal scratch']
  %s0 = inlined_call_operand.hbm [shape: f32[2,4,8,256], index: 0, kind: input, shape index: {}]
  %s1 = inlined_call_operand.hbm [shape: f32[2,8,256], index: 1, kind: input, shape index: {}]
  %s2 = inlined_call_operand.hbm [shape: f32[2,4,8,256], index: 2, kind: output, shape index: {0}]
  %s3 = inlined_call_operand.hbm [shape: f32[2,8,256], index: 3, kind: output, shape index: {1}]
  %4 = xla_tuple %s2, %s3
  %s5 = sld [smem:[#allocation0]]
  $region57: #{tpu_custom_call.1} parent=0
    _
  %s7 = ssub.s32 1, %s5
  %s8 = scalar_select 0, %s7, %s5
  $region1: #{tpu_custom_call.1} parent=0
    #allocation2 [shape = 'u8[65536]{0}', space=vmem, size = 0x10000, scoped, tag = 'input window, operand 0']
    #allocation3 [shape = 's32[2]{0}', space=sflag, size = 0x8, scoped, tag = 'scoped memory for tpu_custom_call.1']
    #allocation4 [shape = 's32[2]{0}', space=sflag, size = 0x8, scoped, tag = 'scoped memory for tpu_custom_call.1']
    #allocation5 [shape = 'u8[16384]{0}', space=vmem, size = 0x4000, scoped, tag = 'input window, operand 1']
    #allocation6 [shape = 's32[2]{0}', space=sflag, size = 0x8, scoped, tag = 'scoped memory for tpu_custom_call.1']
    #allocation7 [shape = 'u8[65536]{0}', space=vmem, size = 0x10000, scoped, tag = 'output window, operand 0']
    #allocation8 [shape = 'u8[16384]{0}', space=vmem, size = 0x4000, scoped, tag = 'output window, operand 1']
    #allocation9 [shape = 's32[2]{0}', space=sflag, size = 0x8, scoped, tag = 'scoped memory for tpu_custom_call.1']
    %9 = vsyncpa [#allocation3], 0
    %s10 = scalar_lea.sflag [#allocation3], 1
    %11 = vsyncpa %s10, 0
    %12 = vsyncpa [#allocation6], 0
    %s13 = scalar_lea.sflag [#allocation6], 1
    %14 = vsyncpa %s13, 0
    %15 = vsyncpa [#allocation4], 0
    %s16 = scalar_lea.sflag [#allocation4], 1
    %17 = vsyncpa %s16, 0
    %18 = vsyncpa [#allocation9], 0
    %s19 = scalar_lea.sflag [#allocation9], 1
    %20 = vsyncpa %s19, 0
    loop: start=0, step=1, limit=4
    $region2: #{tpu_custom_call.1} parent=1 // loop_pre_header
      _
    $region3: #{tpu_custom_call.1} parent=1 // loop_header
      %s22 = sphi 0, %s26
      %p23 = scmp.ge.s32.totalorder %s22, 4
      %s29 = sphi 0, %s41
      %s30 = sphi 0, %s37
      %s31 = sphi 0, %s29
      %s32 = sphi 0, %s30
      %s33 = sphi 0, %s31
      %s34 = sphi 0, %s32
      %s46 = sphi 0, %s48
      %s49 = sphi 0, %s46
      %s50 = sphi 0, %s49
      %s66 = sphi 0, %s50
      %s74 = sphi 0, %s76
      %s77 = sphi 0, %s74
      %s78 = sphi 0, %s77
      %s94 = sphi 0, %s78
      %s102 = sphi 0, %s104
      %s105 = sphi 0, %s102
      %s106 = sphi 0, %s105
      %s122 = sphi 0, %s106
      %s130 = sphi 0, %s132
      %s133 = sphi 0, %s130
      %s134 = sphi 0, %s133
      %s150 = sphi 0, %s134
    $region4: #{tpu_custom_call.1} parent=1 // loop_header_branch
      %25 = sbr.rel (%p23) target = $region8
    $region5: #{tpu_custom_call.1} parent=1 // loop_body
      %s27 = ssub.s32 %s22, 1
      %s28 = ssub.s32 %s22, 2
      %s35 = sadd.s32 1, %s30
      %p36 = scmp.ge.s32.totalorder %s35, 1
      %s37 = scalar_select %p36, 0, %s35
      %s38 = sadd.s32 1, %s29
      %s39 = scalar_select %p36, %s38, %s29
      %p40 = scmp.ge.s32.totalorder %s39, 2
      %s41 = scalar_select %p40, 0, %s39
      %s42 = ssub.s32 %s29, %s41
      %s43 = ssub.s32 %s30, %s37
      %s44 = sor.u32 %s42, %s43
      %p45 = scmp.eq.s32.totalorder %s44, 0
      %s47 = sadd.s32 %s46, 1
      %s48 = scalar_select %p45, %s46, %s47
      %p51 = pneg %p45
      %p52 = scmp.eq.s32.totalorder %s22, 1
      %p53 = por %p51, %p52
      %p54 = scmp.ne.s32.totalorder %s46, %s49
      %p55 = scmp.eq.s32.totalorder %s22, 0
      %p56 = por %p54, %p55
      %p57 = scmp.ne.s32.totalorder %s46, %s49
      %p58 = scmp.eq.s32.totalorder %s27, 1
      %p59 = por %p57, %p58
      %p60 = scmp.ne.s32.totalorder %s49, %s50
      %p61 = scmp.eq.s32.totalorder %s27, 0
      %p62 = por %p60, %p61
      %p63 = scmp.ne.s32.totalorder %s49, %s50
      %p64 = scmp.eq.s32.totalorder %s28, 1
      %p65 = por %p63, %p64
      %p67 = scmp.ne.s32.totalorder %s50, %s66
      %p68 = scmp.eq.s32.totalorder %s28, 0
      %p69 = por %p67, %p68
      %s70 = ssub.s32 %s29, %s41
      %s71 = ssub.s32 %s30, %s37
      %s72 = sor.u32 %s70, %s71
      %p73 = scmp.eq.s32.totalorder %s72, 0
      %s75 = sadd.s32 %s74, 1
      %s76 = scalar_select %p73, %s74, %s75
      %p79 = pneg %p73
      %p80 = scmp.eq.s32.totalorder %s22, 1
      %p81 = por %p79, %p80
      %p82 = scmp.ne.s32.totalorder %s74, %s77
      %p83 = scmp.eq.s32.totalorder %s22, 0
      %p84 = por %p82, %p83
      %p85 = scmp.ne.s32.totalorder %s74, %s77
      %p86 = scmp.eq.s32.totalorder %s27, 1
      %p87 = por %p85, %p86
      %p88 = scmp.ne.s32.totalorder %s77, %s78
      %p89 = scmp.eq.s32.totalorder %s27, 0
      %p90 = por %p88, %p89
      %p91 = scmp.ne.s32.totalorder %s77, %s78
      %p92 = scmp.eq.s32.totalorder %s28, 1
      %p93 = por %p91, %p92
      %p95 = scmp.ne.s32.totalorder %s78, %s94
      %p96 = scmp.eq.s32.totalorder %s28, 0
      %p97 = por %p95, %p96
      %s98 = ssub.s32 %s29, %s41
      %s99 = ssub.s32 %s30, %s37
      %s100 = sor.u32 %s98, %s99
      %p101 = scmp.eq.s32.totalorder %s100, 0
      %s103 = sadd.s32 %s102, 1
      %s104 = scalar_select %p101, %s102, %s103
      %p107 = pneg %p101
      %p108 = scmp.eq.s32.totalorder %s22, 1
      %p109 = por %p107, %p108
      %p110 = scmp.ne.s32.totalorder %s102, %s105
      %p111 = scmp.eq.s32.totalorder %s22, 0
      %p112 = por %p110, %p111
      %p113 = scmp.ne.s32.totalorder %s102, %s105
      %p114 = scmp.eq.s32.totalorder %s27, 1
      %p115 = por %p113, %p114
      %p116 = scmp.ne.s32.totalorder %s105, %s106
      %p117 = scmp.eq.s32.totalorder %s27, 0
      %p118 = por %p116, %p117
      %p119 = scmp.ne.s32.totalorder %s105, %s106
      %p120 = scmp.eq.s32.totalorder %s28, 1
      %p121 = por %p119, %p120
      %p123 = scmp.ne.s32.totalorder %s106, %s122
      %p124 = scmp.eq.s32.totalorder %s28, 0
      %p125 = por %p123, %p124
      %s126 = ssub.s32 %s29, %s41
      %s127 = ssub.s32 %s30, %s37
      %s128 = sor.u32 %s126, %s127
      %p129 = scmp.eq.s32.totalorder %s128, 0
      %s131 = sadd.s32 %s130, 1
      %s132 = scalar_select %p129, %s130, %s131
      %p135 = pneg %p129
      %p136 = scmp.eq.s32.totalorder %s22, 1
      %p137 = por %p135, %p136
      %p138 = scmp.ne.s32.totalorder %s130, %s133
      %p139 = scmp.eq.s32.totalorder %s22, 0
      %p140 = por %p138, %p139
      %p141 = scmp.ne.s32.totalorder %s130, %s133
      %p142 = scmp.eq.s32.totalorder %s27, 1
      %p143 = por %p141, %p142
      %p144 = scmp.ne.s32.totalorder %s133, %s134
      %p145 = scmp.eq.s32.totalorder %s27, 0
      %p146 = por %p144, %p145
      %p147 = scmp.ne.s32.totalorder %s133, %s134
      %p148 = scmp.eq.s32.totalorder %s28, 1
      %p149 = por %p147, %p148
      %p151 = scmp.ne.s32.totalorder %s134, %s150
      %p152 = scmp.eq.s32.totalorder %s28, 0
      %p153 = por %p151, %p152
      %p154 = scmp.le.s32.totalorder 1, %s22
      %p155 = scmp.lt.s32.totalorder %s22, 3
      %p156 = pnand %p154, %p155
      %p157 = pneg %p156
      // Predicated region
      $region9: #{tpu_custom_call.1} parent=5 // pred_check
        _
      $region10: #{tpu_custom_call.1} parent=5 // pred_check_branch
        %159 = sbr.rel (%p156) target = $region12
      $region11: #{tpu_custom_call.1} parent=5 // pred_region
        %s160 = ssub.s32 %s22, 1
      $region12: #{tpu_custom_call.1} parent=5 // pred_fallthru
        _
      %p161 = scmp.lt.s32.totalorder %s22, 2
      // Predicated region
      $region13: #{tpu_custom_call.1} parent=5 // pred_check
        %p162 = pneg %p161
      $region14: #{tpu_custom_call.1} parent=5 // pred_check_branch
        %164 = sbr.rel (%p162) target = $region16
      $region15: #{tpu_custom_call.1} parent=5 // pred_region
        // Predicated region
        $region17: #{tpu_custom_call.1} parent=15 // pred_check
          %p165 = pneg %p56
        $region18: #{tpu_custom_call.1} parent=15 // pred_check_branch
          %167 = sbr.rel (%p165) target = $region20
        $region19: #{tpu_custom_call.1} parent=15 // pred_region
          %s168 = sand.u32 %s46, 1
          %s169 = scalar_lea.sflag [#allocation3], %s168
          %s170 = sand.u32 %s46, 1
          %s171 = smul.addr %s170, 64
          %s172 = scalar_lea.vmem [#allocation2], %s171
          %s174 = ssub.s32 1024, 1024
          %175 = vsyncadd %s169, %s174
          %s176 = smul.addr %s30, 2
          %s177 = smul.addr %s29, 8
          %s178 = sadd.s32 %s176, %s177
          %s179 = smul.addr %s178, 128
          %s180 = scalar_lea.hbm %s0, %s179
          %s181 = sshll.u32 %s172, 4
          %s182 = int_to_ptr.vmem [resolvable:$true] %s181
          %187 = dma.hbm_to_vmem [thread:$0]  %s180, 1024, %s182, %s169, 256, 256, 16
        $region20: #{tpu_custom_call.1} parent=15 // pred_fallthru
          _
        // Predicated region
        $region21: #{tpu_custom_call.1} parent=15 // pred_check
          %p188 = pneg %p84
        $region22: #{tpu_custom_call.1} parent=15 // pred_check_branch
          %190 = sbr.rel (%p188) target = $region24
        $region23: #{tpu_custom_call.1} parent=15 // pred_region
          %s191 = sand.u32 %s74, 1
          %s192 = scalar_lea.sflag [#allocation6], %s191
          %s193 = sand.u32 %s74, 1
          %s194 = smul.addr %s193, 16
          %s195 = scalar_lea.vmem [#allocation5], %s194
          %s197 = ssub.s32 256, 256
          %198 = vsyncadd %s192, %s197
          %s199 = smul.addr %s30, 2
          %s200 = smul.addr %s29, 2
          %s201 = sadd.s32 %s199, %s200
          %s202 = smul.addr %s201, 128
          %s203 = scalar_lea.hbm %s1, %s202
          %s205 = sshll.u32 %s195, 4
          %s206 = int_to_ptr.vmem [resolvable:$true] %s205
          %208 = dma.hbm_to_vmem [thread:$0]  %s203, 256, %s206, %s192
        $region24: #{tpu_custom_call.1} parent=15 // pred_fallthru
          _
      $region16: #{tpu_custom_call.1} parent=5 // pred_fallthru
        _
      %p209 = scmp.le.s32.totalorder 1, %s22
      %p210 = scmp.lt.s32.totalorder %s22, 3
      %p211 = pnand %p209, %p210
      %p212 = pneg %p211
      // Predicated region
      $region25: #{tpu_custom_call.1} parent=5 // pred_check
        _
      $region26: #{tpu_custom_call.1} parent=5 // pred_check_branch
        %214 = sbr.rel (%p211) target = $region28
      $region27: #{tpu_custom_call.1} parent=5 // pred_region
        %s215 = ssub.s32 %s22, 1
        %s216 = sand.u32 %s49, 1
        %s217 = scalar_lea.sflag [#allocation3], %s216
        %s218 = sand.u32 %s49, 1
        %s219 = smul.addr %s218, 64
        %s220 = scalar_lea.vmem [#allocation2], %s219
        // Predicated region
        $region29: #{tpu_custom_call.1} parent=27 // pred_check
          %p221 = pneg %p62
        $region30: #{tpu_custom_call.1} parent=27 // pred_check_branch
          %223 = sbr.rel (%p221) target = $region32
        $region31: #{tpu_custom_call.1} parent=27 // pred_region
          %224 = dma.done %s217, 1024
        $region32: #{tpu_custom_call.1} parent=27 // pred_fallthru
          _
        %s225 = sand.u32 %s77, 1
        %s226 = scalar_lea.sflag [#allocation6], %s225
        %s227 = sand.u32 %s77, 1
        %s228 = smul.addr %s227, 16
        %s229 = scalar_lea.vmem [#allocation5], %s228
        // Predicated region
        $region33: #{tpu_custom_call.1} parent=27 // pred_check
          %p230 = pneg %p90
        $region34: #{tpu_custom_call.1} parent=27 // pred_check_branch
          %232 = sbr.rel (%p230) target = $region36
        $region35: #{tpu_custom_call.1} parent=27 // pred_region
          %233 = dma.done %s226, 256
        $region36: #{tpu_custom_call.1} parent=27 // pred_fallthru
          _
        %s234 = sand.u32 %s49, 1
        %s235 = scalar_lea.sflag [#allocation3], %s234
        %s236 = sand.u32 %s49, 1
        %s237 = smul.addr %s236, 64
        %s238 = scalar_lea.vmem [#allocation2], %s237
        %p239 = pneg %p62
        %p240 = pneg %p59
        %s241 = sand.u32 %s77, 1
        %s242 = scalar_lea.sflag [#allocation6], %s241
        %s243 = sand.u32 %s77, 1
        %s244 = smul.addr %s243, 16
        %s245 = scalar_lea.vmem [#allocation5], %s244
        %p246 = pneg %p90
        %p247 = pneg %p87
        %p248 = pneg %p118
        %p249 = pneg %p115
        %s250 = sand.u32 %s105, 1
        %s251 = scalar_lea.sflag [#allocation4], %s250
        %s252 = sand.u32 %s105, 1
        %s253 = smul.addr %s252, 64
        %s254 = scalar_lea.vmem [#allocation7], %s253
        %p255 = pneg %p146
        %p256 = pneg %p143
        %s257 = sand.u32 %s133, 1
        %s258 = scalar_lea.sflag [#allocation9], %s257
        %s259 = sand.u32 %s133, 1
        %s260 = smul.addr %s259, 16
        %s261 = scalar_lea.vmem [#allocation8], %s260
        %v262 = vld [vmem:[%s220] sm:$0xff]
        %v263 = vld [vmem:[%s220 + $0x8] sm:$0xff]
        %v264 = vld [vmem:[%s220 + $0x10] sm:$0xff]
        %v265 = vld [vmem:[%s220 + $0x18] sm:$0xff]
        %v266 = vld [vmem:[%s220 + $0x20] sm:$0xff]
        %v267 = vld [vmem:[%s220 + $0x28] sm:$0xff]
        %v268 = vld [vmem:[%s220 + $0x30] sm:$0xff]
        %v269 = vld [vmem:[%s220 + $0x38] sm:$0xff]
        %v270 = vld [vmem:[%s229] sm:$0xff]
        %v271 = vld [vmem:[%s229 + $0x8] sm:$0xff]
        %v272 = vadd.f32 %v262, %v264
        %v273 = vadd.f32 %v272, %v266
        %v274 = vadd.f32 %v273, %v268
        %v275 = vadd.f32 %v263, %v265
        %v276 = vadd.f32 %v275, %v267
        %v277 = vadd.f32 %v276, %v269
        %v278 = vrcp.pop 4.0
        %v279 = vmul.f32 %v274, %v278
        %v280 = vmul.f32 %v277, %v278
        %v281 = vmax.f32 %v262, %v266
        %v282 = vmax.f32 %v264, %v268
        %v283 = vmax.f32 %v281, %v282
        %v284 = vmax.f32 %v263, %v267
        %v285 = vmax.f32 %v265, %v269
        %v286 = vmax.f32 %v284, %v285
        %v287 = vxor.u32 %v279, 2147483648
        %v288 = vxor.u32 %v280, 2147483648
        %v289 = vmul.f32 %v287, 1.442695
        %v290 = vpow.pop %v289
        %v291 = vmul.f32 %v288, 1.442695
        %v292 = vpow.pop %v291
        %v293 = vadd.f32 %v290, 1.0
        %v294 = vadd.f32 %v292, 1.0
        %v295 = vrcp.pop %v293
        %v296 = vmul.f32 1.0, %v295
        %v297 = vrcp.pop %v294
        %v298 = vmul.f32 1.0, %v297
        %v299 = vxor.u32 %v283, 2147483648
        %v300 = vxor.u32 %v286, 2147483648
        %v301 = vmul.f32 %v299, 1.442695
        %v302 = vpow.pop %v301
        %v303 = vmul.f32 %v300, 1.442695
        %v304 = vpow.pop %v303
        %v305 = vadd.f32 %v302, 1.0
        %v306 = vadd.f32 %v304, 1.0
        %v307 = vrcp.pop %v305
        %v308 = vmul.f32 1.0, %v307
        %v309 = vrcp.pop %v306
        %v310 = vmul.f32 1.0, %v309
        %v311 = vadd.f32 %v296, %v308
        %v312 = vadd.f32 %v298, %v310
        %v313 = vadd.f32 %v311, %v270
        %v314 = vadd.f32 %v312, %v271
        %v315 = vmax.f32 %v313, %v314
        %316 = vmax.xlane.f32.xlu0 %v315
        %v317 = vpop.xlane.xlu0 %316
        %v318 = vsub.f32 %v313, %v317
        %v319 = vsub.f32 %v314, %v317
        %v320 = vmul.f32 %v318, 1.442695
        %v321 = vpow.pop %v320
        %v322 = vmul.f32 %v319, 1.442695
        %v323 = vpow.pop %v322
        %v324 = vadd.f32 %v321, %v323
        %325 = vadd.xlane.f32.xlu0 %v324
        %v326 = vpop.xlane.xlu0 %325
        %v327 = vrcp.pop %v326
        %v328 = vmul.f32 %v326, %v327
        %v329 = vsub.f32 2.0, %v328
        %v330 = vmul.f32 %v327, %v329
        %v331 = vmul.f32 %v321, %v330
        %v332 = vmul.f32 %v323, %v330
        %v333 = vmul.f32 %v262, %v331
        %v334 = vmul.f32 %v263, %v332
        %v335 = vmul.f32 %v264, %v331
        %v336 = vmul.f32 %v265, %v332
        %v337 = vmul.f32 %v266, %v331
        %v338 = vmul.f32 %v267, %v332
        %v339 = vmul.f32 %v268, %v331
        %v340 = vmul.f32 %v269, %v332
        %341 = vst [vmem:[%s254] sm:$0xff] %v333
        %342 = vst [vmem:[%s254 + $0x8] sm:$0xff] %v334
        %343 = vst [vmem:[%s254 + $0x10] sm:$0xff] %v335
        %344 = vst [vmem:[%s254 + $0x18] sm:$0xff] %v336
        %345 = vst [vmem:[%s254 + $0x20] sm:$0xff] %v337
        %346 = vst [vmem:[%s254 + $0x28] sm:$0xff] %v338
        %347 = vst [vmem:[%s254 + $0x30] sm:$0xff] %v339
        %348 = vst [vmem:[%s254 + $0x38] sm:$0xff] %v340
        %349 = vst [vmem:[%s261] sm:$0xff] %v331
        %350 = vst [vmem:[%s261 + $0x8] sm:$0xff] %v332
        %s351 = sand.u32 %s105, 1
        %s352 = scalar_lea.sflag [#allocation4], %s351
        %s353 = sand.u32 %s105, 1
        %s354 = smul.addr %s353, 64
        %s355 = scalar_lea.vmem [#allocation7], %s354
        %s356 = sand.u32 %s133, 1
        %s357 = scalar_lea.sflag [#allocation9], %s356
        %s358 = sand.u32 %s133, 1
        %s359 = smul.addr %s358, 16
        %s360 = scalar_lea.vmem [#allocation8], %s359
        // Predicated region
        $region37: #{tpu_custom_call.1} parent=27 // pred_check
          %p361 = pneg %p115
        $region38: #{tpu_custom_call.1} parent=27 // pred_check_branch
          %363 = sbr.rel (%p361) target = $region40
        $region39: #{tpu_custom_call.1} parent=27 // pred_region
          %s365 = ssub.s32 1024, 1024
          %366 = vsyncadd %s352, %s365
          %s367 = smul.addr %s32, 2
          %s368 = smul.addr %s31, 8
          %s369 = sadd.s32 %s367, %s368
          %s370 = smul.addr %s369, 128
          %s371 = scalar_lea.hbm %s2, %s370
          %s372 = sshll.u32 %s355, 4
          %s373 = int_to_ptr.vmem [resolvable:$true] %s372
          %378 = dma.vmem_to_hbm [thread:$0]  %s373, 1024, %s371, %s352, 256, 256, 16
        $region40: #{tpu_custom_call.1} parent=27 // pred_fallthru
          _
        // Predicated region
        $region41: #{tpu_custom_call.1} parent=27 // pred_check
          %p379 = pneg %p143
        $region42: #{tpu_custom_call.1} parent=27 // pred_check_branch
          %381 = sbr.rel (%p379) target = $region44
        $region43: #{tpu_custom_call.1} parent=27 // pred_region
          %s383 = ssub.s32 256, 256
          %384 = vsyncadd %s357, %s383
          %s385 = smul.addr %s32, 2
          %s386 = smul.addr %s31, 2
          %s387 = sadd.s32 %s385, %s386
          %s388 = smul.addr %s387, 128
          %s389 = scalar_lea.hbm %s3, %s388
          %s391 = sshll.u32 %s360, 4
          %s392 = int_to_ptr.vmem [resolvable:$true] %s391
          %394 = dma.vmem_to_hbm [thread:$0]  %s392, 256, %s389, %s357
        $region44: #{tpu_custom_call.1} parent=27 // pred_fallthru
          _
      $region28: #{tpu_custom_call.1} parent=5 // pred_fallthru
        _
      %p395 = scmp.le.s32.totalorder 2, %s22
      // Predicated region
      $region45: #{tpu_custom_call.1} parent=5 // pred_check
        %p396 = pneg %p395
      $region46: #{tpu_custom_call.1} parent=5 // pred_check_branch
        %398 = sbr.rel (%p396) target = $region48
      $region47: #{tpu_custom_call.1} parent=5 // pred_region
        %s399 = ssub.s32 %s22, 2
        // Predicated region
        $region49: #{tpu_custom_call.1} parent=47 // pred_check
          %p400 = pneg %p121
        $region50: #{tpu_custom_call.1} parent=47 // pred_check_branch
          %402 = sbr.rel (%p400) target = $region52
        $region51: #{tpu_custom_call.1} parent=47 // pred_region
          %s403 = sand.u32 %s106, 1
          %s404 = scalar_lea.sflag [#allocation4], %s403
          %s405 = sand.u32 %s106, 1
          %s406 = smul.addr %s405, 64
          %s407 = scalar_lea.vmem [#allocation7], %s406
          %408 = dma.done %s404, 1024
        $region52: #{tpu_custom_call.1} parent=47 // pred_fallthru
          _
        // Predicated region
        $region53: #{tpu_custom_call.1} parent=47 // pred_check
          %p409 = pneg %p149
        $region54: #{tpu_custom_call.1} parent=47 // pred_check_branch
          %411 = sbr.rel (%p409) target = $region56
        $region55: #{tpu_custom_call.1} parent=47 // pred_region
          %s412 = sand.u32 %s134, 1
          %s413 = scalar_lea.sflag [#allocation9], %s412
          %s414 = sand.u32 %s134, 1
          %s415 = smul.addr %s414, 16
          %s416 = scalar_lea.vmem [#allocation8], %s415
          %417 = dma.done %s413, 256
        $region56: #{tpu_custom_call.1} parent=47 // pred_fallthru
          _
      $region48: #{tpu_custom_call.1} parent=5 // pred_fallthru
        _
    $region6: #{tpu_custom_call.1} parent=1 // loop_footer
      %s26 = sadd.s32 1, %s22
    $region7: #{tpu_custom_call.1} parent=1 // loop_footer_branch
      %21 = sbr.rel target = $region3
    $region8: #{tpu_custom_call.1} parent=1 // loop_exit
      _
    %418 = vsyncpa [#allocation3], 1
    %s419 = scalar_lea.sflag [#allocation3], 1
    %420 = vsyncpa %s419, 1
    %421 = vsyncpa [#allocation6], 1
    %s422 = scalar_lea.sflag [#allocation6], 1
    %423 = vsyncpa %s422, 1
    %424 = vsyncpa [#allocation4], 1
    %s425 = scalar_lea.sflag [#allocation4], 1
    %426 = vsyncpa %s425, 1
    %427 = vsyncpa [#allocation9], 1
    %s428 = scalar_lea.sflag [#allocation9], 1
    %429 = vsyncpa %s428, 1

</llo_original>
